<compile_context>
chip_gen: v7x
topology: tpu7x:2x2x1
jax: 0.10.0
libtpu: 0.0.40
codegen_flags: <defaults>
</compile_context>

<pallas_src>
import functools

import jax
import jax.numpy as jnp
from jax.experimental import pallas as pl
from jax.experimental.pallas import tpu as pltpu

# CartPole-v0/v1 dimensions
N_STATES = 4      # env.observation_space.shape[0]
N_ACTIONS = 2     # env.action_space.n
HIDDEN = 10

# Padded / packed layout constants
FEAT_PAD = 8            # x presented to the kernel as (8, TB): rows 0..3 = features, rest 0
OUT_PAD = 8             # Q-value output block is a full (8, TB) slab: rows 0..1 = actions
P_ROWS, P_COLS = 24, 128
W2_ROW = 16             # rows 16..23 hold the (zero-padded) out-layer weights / bias

# Tiling policy (feedback item 1): single block up to 1024 lanes, split above that.
SINGLE_TILE_MAX = 1024
MAX_TILE = 2048


def _round_up(n, m):
    return ((n + m - 1) // m) * m


def _tiles(B):
    """Return (TB, Bp): lane tile size and padded batch, minimizing padding + grid steps."""
    Bp0 = _round_up(max(B, 1), 128)
    if Bp0 <= SINGLE_TILE_MAX:
        return Bp0, Bp0                               # one full-size block, grid=(1,)
    nt = max(2, -(-Bp0 // MAX_TILE))                  # >=2 tiles -> shards across v7x TCs
    TB = _round_up(-(-Bp0 // nt), 128)
    return TB, TB * nt


# ----------------------------------------------------------------------------- kernels

def _mlp_block(x, p, out_rows):
    """Shared VPU MAC body. x: (FEAT_PAD, TB); p: (P_ROWS, P_COLS); returns (out_rows, TB)."""
    tb = x.shape[1]

    # fc1 + ReLU: h[j, :] = b1[j] + sum_k w1[j, k] * x[k, :]
    h = jnp.broadcast_to(p[0:HIDDEN, N_STATES:N_STATES + 1], (HIDDEN, tb))
    for k in range(N_STATES):                         # static, fully unrolled (K = 4)
        h = h + p[0:HIDDEN, k:k + 1] * x[k:k + 1, :]
    h = jnp.maximum(h, 0.0)

    # out layer: y[a, :] = b2[a] + sum_k w2[a, k] * h[k, :]
    y = jnp.broadcast_to(p[W2_ROW:W2_ROW + out_rows, HIDDEN:HIDDEN + 1], (out_rows, tb))
    for k in range(HIDDEN):                           # static, fully unrolled (K = 10)
        y = y + p[W2_ROW:W2_ROW + out_rows, k:k + 1] * h[k:k + 1, :]
    return y


def net_kernel(x_ref, p_ref, o_ref):
    """Q-value kernel: writes a full unmasked lane-dense (OUT_PAD, TB) slab."""
    o_ref[...] = _mlp_block(x_ref[...], p_ref[...], OUT_PAD)


def net_argmax_kernel(x_ref, p_ref, a_ref):
    """Fused action-selection kernel: argmax over actions, single (1, TB) int32 row out."""
    y = _mlp_block(x_ref[...], p_ref[...], N_ACTIONS)
    tb = y.shape[1]
    best = y[0:1, :]
    best_i = jnp.zeros((1, tb), jnp.int32)
    for a in range(1, N_ACTIONS):                     # static, N_ACTIONS = 2
        cur = y[a:a + 1, :]
        take = cur > best                             # strict '>' keeps first max (torch.max)
        best = jnp.where(take, cur, best)
        best_i = jnp.where(take, jnp.full_like(best_i, a), best_i)
    a_ref[...] = best_i


# ----------------------------------------------------------------------------- wrappers

def _grid_spec(TB, Bp, out_rows, out_dtype):
    grid = (Bp // TB,)
    return dict(
        out_shape=jax.ShapeDtypeStruct((out_rows, Bp), out_dtype),
        grid_spec=pltpu.PrefetchScalarGridSpec(
            num_scalar_prefetch=0,
            grid=grid,
            in_specs=[
                pl.BlockSpec((FEAT_PAD, TB), lambda i: (0, i)),    # batch-tiled activations
                pl.BlockSpec((P_ROWS, P_COLS), lambda i: (0, 0)),  # params stay resident
            ],
            out_specs=pl.BlockSpec((out_rows, TB), lambda i: (0, i)),
        ),
        compiler_params=pltpu.CompilerParams(
            dimension_semantics=("parallel",),   # independent batch tiles (v7x dual-TC)
        ),
    )


def net_forward_fb(xt, params, TB=None):
    """Zero-wrapper path: xt is already the (FEAT_PAD, Bp) lane-dense slab.

    Returns the raw (OUT_PAD, Bp) Q-value slab (rows 0..N_ACTIONS-1 are valid)."""
    Bp = xt.shape[1]
    if TB is None:
        TB, _ = _tiles(Bp)
    return pl.pallas_call(net_kernel, **_grid_spec(TB, Bp, OUT_PAD, jnp.float32))(xt, params)


def _pack_states(x, Bp):
    """One fused pad-of-transpose: (B, N_STATES) -> (FEAT_PAD, Bp)."""
    B = x.shape[0]
    return jnp.pad(x.astype(jnp.float32).T,
                   ((0, FEAT_PAD - N_STATES), (0, Bp - B)))


@jax.jit
def net_forward(x, params):
    """PyTorch-convention forward: (B, N_STATES) -> (B, N_ACTIONS) Q-values."""
    if x.ndim == 1:
        x = x[None, :]
    B = x.shape[0]
    TB, Bp = _tiles(B)
    out = net_forward_fb(_pack_states(x, Bp), params, TB)
    return out[:N_ACTIONS, :B].T


@jax.jit
def net_select_action(x, params):
    """Fused argmax path for action selection: (B, N_STATES) -> (B,) int32 actions."""
    if x.ndim == 1:
        x = x[None, :]
    B = x.shape[0]
    TB, Bp = _tiles(B)
    xt = _pack_states(x, Bp)
    acts = pl.pallas_call(net_argmax_kernel,
                          **_grid_spec(TB, Bp, 1, jnp.int32))(xt, params)
    return acts[0, :B]


# ----------------------------------------------------------------------------- params

def pack_params(w1, b1, w2, b2):
    """Pack PyTorch-shaped params into one (P_ROWS, P_COLS) f32 slab.

    w1: (HIDDEN, N_STATES) = fc1.weight   b1: (HIDDEN,)    = fc1.bias
    w2: (N_ACTIONS, HIDDEN) = out.weight  b2: (N_ACTIONS,) = out.bias
    Rows 0..9  : [W1 | b1]  (cols 0..3 | col 4)
    Rows 16..23: [W2 | b2]  (cols 0..9 | col 10), zero-padded to 8 output rows."""
    p = jnp.zeros((P_ROWS, P_COLS), jnp.float32)
    p = p.at[0:HIDDEN, 0:N_STATES].set(w1.astype(jnp.float32))
    p = p.at[0:HIDDEN, N_STATES].set(b1.astype(jnp.float32))
    p = p.at[W2_ROW:W2_ROW + N_ACTIONS, 0:HIDDEN].set(w2.astype(jnp.float32))
    p = p.at[W2_ROW:W2_ROW + N_ACTIONS, HIDDEN].set(b2.astype(jnp.float32))
    return p


def init_params(key):
    """Deterministic init mirroring the PyTorch module:
    weights ~ N(0, 0.1); biases use Linear's default uniform(-1/sqrt(fan_in), 1/sqrt(fan_in))."""
    k1, k2, k3, k4 = jax.random.split(key, 4)
    w1 = 0.1 * jax.random.normal(k1, (HIDDEN, N_STATES), jnp.float32)   # fc1.weight
    b1 = jax.random.uniform(k2, (HIDDEN,), jnp.float32,
                            minval=-1.0 / jnp.sqrt(N_STATES),
                            maxval=1.0 / jnp.sqrt(N_STATES))
    w2 = 0.1 * jax.random.normal(k3, (N_ACTIONS, HIDDEN), jnp.float32)  # out.weight
    b2 = jax.random.uniform(k4, (N_ACTIONS,), jnp.float32,
                            minval=-1.0 / jnp.sqrt(HIDDEN),
                            maxval=1.0 / jnp.sqrt(HIDDEN))
    return w1, b1, w2, b2


def reference_forward(x, w1, b1, w2, b2):
    h = jnp.maximum(x @ w1.T + b1, 0.0)
    return h @ w2.T + b2


if __name__ == "__main__":
    key = jax.random.PRNGKey(0)
    pkey, xkey1, xkey2, xkey3 = jax.random.split(key, 4)
    w1, b1, w2, b2 = init_params(pkey)
    params = pack_params(w1, b1, w2, b2)

    # Tiny action-selection batch (single 128-lane tile); tests Q values + fused argmax.
    x_small = jax.random.normal(xkey1, (2, N_STATES), jnp.float32)
    out_small = jax.block_until_ready(net_forward(x_small, params))
    ref_small = reference_forward(x_small, w1, b1, w2, b2)
    assert out_small.shape == (2, N_ACTIONS)
    assert jnp.allclose(out_small, ref_small, atol=1e-5, rtol=1e-5)

    act_small = jax.block_until_ready(net_select_action(x_small, params))
    assert act_small.shape == (2,)
    assert jnp.array_equal(act_small, jnp.argmax(ref_small, axis=1).astype(jnp.int32))

    # Replay-buffer sized batch: now a single full-size 640-lane block, grid=(1,).
    x_big = jax.random.normal(xkey2, (600, N_STATES), jnp.float32)
    out_big = jax.block_until_ready(net_forward(x_big, params))
    ref_big = reference_forward(x_big, w1, b1, w2, b2)
    assert out_big.shape == (600, N_ACTIONS)
    assert jnp.allclose(out_big, ref_big, atol=1e-5, rtol=1e-5)

    # Large eval batch: exercises the multi-tile ("parallel") path, grid=(2,).
    x_huge = jax.random.normal(xkey3, (1500, N_STATES), jnp.float32)
    out_huge = jax.block_until_ready(net_forward(x_huge, params))
    ref_huge = reference_forward(x_huge, w1, b1, w2, b2)
    assert out_huge.shape == (1500, N_ACTIONS)
    assert jnp.allclose(out_huge, ref_huge, atol=1e-5, rtol=1e-5)

    act_huge = jax.block_until_ready(net_select_action(x_huge, params))
    assert jnp.array_equal(act_huge, jnp.argmax(ref_huge, axis=1).astype(jnp.int32))

    print("KERNEL_OK")
</pallas_src>

<mosaic_0001>
module attributes {stable_mosaic.version = 11 : i64} {
  func.func @net_kernel(%arg0: i32, %arg1: memref<8x128xf32, #tpu.memory_space<vmem>>, %arg2: memref<24x128xf32, #tpu.memory_space<vmem>>, %arg3: memref<8x128xf32, #tpu.memory_space<vmem>>) attributes {dimension_semantics = [#tpu.dimension_semantics<parallel>], iteration_bounds = array<i64: 1>, scalar_prefetch = 0 : i64, scratch_operands = 0 : i64, tpu.core_type = #tpu.core_type<tc>, window_params = [{transform_indices = @transform_0, window_bounds = array<i64: 8, 128>}, {pipeline_mode = #tpu.pipeline_mode<synchronous>, transform_indices = @transform_1, window_bounds = array<i64: 24, 128>}, {transform_indices = @transform_2, window_bounds = array<i64: 8, 128>}]} {
    %c0 = arith.constant 0 : index
    %c0_0 = arith.constant 0 : index
    %0 = vector.load %arg1[%c0, %c0_0] : memref<8x128xf32, #tpu.memory_space<vmem>>, vector<8x128xf32>
    %c0_1 = arith.constant 0 : index
    %c0_2 = arith.constant 0 : index
    %1 = vector.load %arg2[%c0_1, %c0_2] : memref<24x128xf32, #tpu.memory_space<vmem>>, vector<24x128xf32>
    %2 = vector.extract_strided_slice %1 {offsets = [0, 4], sizes = [10, 1], strides = [1, 1]} : vector<24x128xf32> to vector<10x1xf32>
    %3 = vector.shape_cast %2 : vector<10x1xf32> to vector<10x1xf32>
    %4 = vector.broadcast %3 : vector<10x1xf32> to vector<10x128xf32>
    %5 = vector.extract_strided_slice %1 {offsets = [0, 0], sizes = [10, 1], strides = [1, 1]} : vector<24x128xf32> to vector<10x1xf32>
    %6 = vector.extract_strided_slice %0 {offsets = [0, 0], sizes = [1, 128], strides = [1, 1]} : vector<8x128xf32> to vector<1x128xf32>
    %7 = vector.broadcast %5 : vector<10x1xf32> to vector<10x128xf32>
    %8 = vector.broadcast %6 : vector<1x128xf32> to vector<10x128xf32>
    %9 = arith.mulf %7, %8 : vector<10x128xf32>
    %10 = arith.addf %4, %9 : vector<10x128xf32>
    %11 = vector.extract_strided_slice %1 {offsets = [0, 1], sizes = [10, 1], strides = [1, 1]} : vector<24x128xf32> to vector<10x1xf32>
    %12 = vector.extract_strided_slice %0 {offsets = [1, 0], sizes = [1, 128], strides = [1, 1]} : vector<8x128xf32> to vector<1x128xf32>
    %13 = vector.broadcast %11 : vector<10x1xf32> to vector<10x128xf32>
    %14 = vector.broadcast %12 : vector<1x128xf32> to vector<10x128xf32>
    %15 = arith.mulf %13, %14 : vector<10x128xf32>
    %16 = arith.addf %10, %15 : vector<10x128xf32>
    %17 = vector.extract_strided_slice %1 {offsets = [0, 2], sizes = [10, 1], strides = [1, 1]} : vector<24x128xf32> to vector<10x1xf32>
    %18 = vector.extract_strided_slice %0 {offsets = [2, 0], sizes = [1, 128], strides = [1, 1]} : vector<8x128xf32> to vector<1x128xf32>
    %19 = vector.broadcast %17 : vector<10x1xf32> to vector<10x128xf32>
    %20 = vector.broadcast %18 : vector<1x128xf32> to vector<10x128xf32>
    %21 = arith.mulf %19, %20 : vector<10x128xf32>
    %22 = arith.addf %16, %21 : vector<10x128xf32>
    %23 = vector.extract_strided_slice %1 {offsets = [0, 3], sizes = [10, 1], strides = [1, 1]} : vector<24x128xf32> to vector<10x1xf32>
    %24 = vector.extract_strided_slice %0 {offsets = [3, 0], sizes = [1, 128], strides = [1, 1]} : vector<8x128xf32> to vector<1x128xf32>
    %25 = vector.broadcast %23 : vector<10x1xf32> to vector<10x128xf32>
    %26 = vector.broadcast %24 : vector<1x128xf32> to vector<10x128xf32>
    %27 = arith.mulf %25, %26 : vector<10x128xf32>
    %28 = arith.addf %22, %27 : vector<10x128xf32>
    %cst = arith.constant 0.000000e+00 : f32
    %29 = vector.broadcast %cst : f32 to vector<10x128xf32>
    %30 = arith.maximumf %28, %29 : vector<10x128xf32>
    %31 = vector.extract_strided_slice %1 {offsets = [16, 10], sizes = [8, 1], strides = [1, 1]} : vector<24x128xf32> to vector<8x1xf32>
    %32 = vector.shape_cast %31 : vector<8x1xf32> to vector<8x1xf32>
    %33 = vector.broadcast %32 : vector<8x1xf32> to vector<8x128xf32>
    %34 = vector.extract_strided_slice %1 {offsets = [16, 0], sizes = [8, 1], strides = [1, 1]} : vector<24x128xf32> to vector<8x1xf32>
    %35 = vector.extract_strided_slice %30 {offsets = [0, 0], sizes = [1, 128], strides = [1, 1]} : vector<10x128xf32> to vector<1x128xf32>
    %36 = vector.broadcast %34 : vector<8x1xf32> to vector<8x128xf32>
    %37 = vector.broadcast %35 : vector<1x128xf32> to vector<8x128xf32>
    %38 = arith.mulf %36, %37 : vector<8x128xf32>
    %39 = arith.addf %33, %38 : vector<8x128xf32>
    %40 = vector.extract_strided_slice %1 {offsets = [16, 1], sizes = [8, 1], strides = [1, 1]} : vector<24x128xf32> to vector<8x1xf32>
    %41 = vector.extract_strided_slice %30 {offsets = [1, 0], sizes = [1, 128], strides = [1, 1]} : vector<10x128xf32> to vector<1x128xf32>
    %42 = vector.broadcast %40 : vector<8x1xf32> to vector<8x128xf32>
    %43 = vector.broadcast %41 : vector<1x128xf32> to vector<8x128xf32>
    %44 = arith.mulf %42, %43 : vector<8x128xf32>
    %45 = arith.addf %39, %44 : vector<8x128xf32>
    %46 = vector.extract_strided_slice %1 {offsets = [16, 2], sizes = [8, 1], strides = [1, 1]} : vector<24x128xf32> to vector<8x1xf32>
    %47 = vector.extract_strided_slice %30 {offsets = [2, 0], sizes = [1, 128], strides = [1, 1]} : vector<10x128xf32> to vector<1x128xf32>
    %48 = vector.broadcast %46 : vector<8x1xf32> to vector<8x128xf32>
    %49 = vector.broadcast %47 : vector<1x128xf32> to vector<8x128xf32>
    %50 = arith.mulf %48, %49 : vector<8x128xf32>
    %51 = arith.addf %45, %50 : vector<8x128xf32>
    %52 = vector.extract_strided_slice %1 {offsets = [16, 3], sizes = [8, 1], strides = [1, 1]} : vector<24x128xf32> to vector<8x1xf32>
    %53 = vector.extract_strided_slice %30 {offsets = [3, 0], sizes = [1, 128], strides = [1, 1]} : vector<10x128xf32> to vector<1x128xf32>
    %54 = vector.broadcast %52 : vector<8x1xf32> to vector<8x128xf32>
    %55 = vector.broadcast %53 : vector<1x128xf32> to vector<8x128xf32>
    %56 = arith.mulf %54, %55 : vector<8x128xf32>
    %57 = arith.addf %51, %56 : vector<8x128xf32>
    %58 = vector.extract_strided_slice %1 {offsets = [16, 4], sizes = [8, 1], strides = [1, 1]} : vector<24x128xf32> to vector<8x1xf32>
    %59 = vector.extract_strided_slice %30 {offsets = [4, 0], sizes = [1, 128], strides = [1, 1]} : vector<10x128xf32> to vector<1x128xf32>
    %60 = vector.broadcast %58 : vector<8x1xf32> to vector<8x128xf32>
    %61 = vector.broadcast %59 : vector<1x128xf32> to vector<8x128xf32>
    %62 = arith.mulf %60, %61 : vector<8x128xf32>
    %63 = arith.addf %57, %62 : vector<8x128xf32>
    %64 = vector.extract_strided_slice %1 {offsets = [16, 5], sizes = [8, 1], strides = [1, 1]} : vector<24x128xf32> to vector<8x1xf32>
    %65 = vector.extract_strided_slice %30 {offsets = [5, 0], sizes = [1, 128], strides = [1, 1]} : vector<10x128xf32> to vector<1x128xf32>
    %66 = vector.broadcast %64 : vector<8x1xf32> to vector<8x128xf32>
    %67 = vector.broadcast %65 : vector<1x128xf32> to vector<8x128xf32>
    %68 = arith.mulf %66, %67 : vector<8x128xf32>
    %69 = arith.addf %63, %68 : vector<8x128xf32>
    %70 = vector.extract_strided_slice %1 {offsets = [16, 6], sizes = [8, 1], strides = [1, 1]} : vector<24x128xf32> to vector<8x1xf32>
    %71 = vector.extract_strided_slice %30 {offsets = [6, 0], sizes = [1, 128], strides = [1, 1]} : vector<10x128xf32> to vector<1x128xf32>
    %72 = vector.broadcast %70 : vector<8x1xf32> to vector<8x128xf32>
    %73 = vector.broadcast %71 : vector<1x128xf32> to vector<8x128xf32>
    %74 = arith.mulf %72, %73 : vector<8x128xf32>
    %75 = arith.addf %69, %74 : vector<8x128xf32>
    %76 = vector.extract_strided_slice %1 {offsets = [16, 7], sizes = [8, 1], strides = [1, 1]} : vector<24x128xf32> to vector<8x1xf32>
    %77 = vector.extract_strided_slice %30 {offsets = [7, 0], sizes = [1, 128], strides = [1, 1]} : vector<10x128xf32> to vector<1x128xf32>
    %78 = vector.broadcast %76 : vector<8x1xf32> to vector<8x128xf32>
    %79 = vector.broadcast %77 : vector<1x128xf32> to vector<8x128xf32>
    %80 = arith.mulf %78, %79 : vector<8x128xf32>
    %81 = arith.addf %75, %80 : vector<8x128xf32>
    %82 = vector.extract_strided_slice %1 {offsets = [16, 8], sizes = [8, 1], strides = [1, 1]} : vector<24x128xf32> to vector<8x1xf32>
    %83 = vector.extract_strided_slice %30 {offsets = [8, 0], sizes = [1, 128], strides = [1, 1]} : vector<10x128xf32> to vector<1x128xf32>
    %84 = vector.broadcast %82 : vector<8x1xf32> to vector<8x128xf32>
    %85 = vector.broadcast %83 : vector<1x128xf32> to vector<8x128xf32>
    %86 = arith.mulf %84, %85 : vector<8x128xf32>
    %87 = arith.addf %81, %86 : vector<8x128xf32>
    %88 = vector.extract_strided_slice %1 {offsets = [16, 9], sizes = [8, 1], strides = [1, 1]} : vector<24x128xf32> to vector<8x1xf32>
    %89 = vector.extract_strided_slice %30 {offsets = [9, 0], sizes = [1, 128], strides = [1, 1]} : vector<10x128xf32> to vector<1x128xf32>
    %90 = vector.broadcast %88 : vector<8x1xf32> to vector<8x128xf32>
    %91 = vector.broadcast %89 : vector<1x128xf32> to vector<8x128xf32>
    %92 = arith.mulf %90, %91 : vector<8x128xf32>
    %93 = arith.addf %87, %92 : vector<8x128xf32>
    %c0_3 = arith.constant 0 : index
    %c0_4 = arith.constant 0 : index
    %94 = vector.load %arg3[%c0_3, %c0_4] : memref<8x128xf32, #tpu.memory_space<vmem>>, vector<8x128xf32>
    tpu.vector_store %arg3[%c0_3, %c0_4], %93 {strides = array<i32>} : memref<8x128xf32, #tpu.memory_space<vmem>>, vector<8x128xf32>,
    return
  }
  func.func @transform_0(%arg0: i32) -> (i32, i32) {
    %c0_i32 = arith.constant 0 : i32
    %c0_i32_0 = arith.constant 0 : i32
    return %c0_i32, %arg0 : i32, i32
  }
  func.func @transform_1(%arg0: i32) -> (i32, i32) {
    %c0_i32 = arith.constant 0 : i32
    %c0_i32_0 = arith.constant 0 : i32
    %c0_i32_1 = arith.constant 0 : i32
    return %c0_i32, %c0_i32_0 : i32, i32
  }
  func.func @transform_2(%arg0: i32) -> (i32, i32) {
    %c0_i32 = arith.constant 0 : i32
    %c0_i32_0 = arith.constant 0 : i32
    return %c0_i32, %arg0 : i32, i32
  }
}

</mosaic_0001>

<llo_original>
// kernel: net_forward.1
$region0: #{net_forward.1}
  #allocation0 [shape = 'u32[]', space=smem, size = 0x4, offset = 0x4, fixed_abs, tag = 'smem constant byte address 0x4 - core index']
  #allocation1 [shape = 'u32[144,128]{1,0:T(1,128)}', space=vmem, size = 0x12000, scoped, tag = 'internal scratch']
  %s0 = inlined_call_operand.vmem [shape: f32[8,128], index: 0, kind: input, shape index: {}]
  %s1 = inlined_call_operand.vmem [shape: f32[24,128], index: 1, kind: input, shape index: {}]
  %s2 = inlined_call_operand.vmem [shape: f32[8,128], index: 2, kind: output, shape index: {}]
  %s3 = sld [smem:[#allocation0]]
  $region18: #{net_forward.1} parent=0
    _
  %s5 = ssub.s32 1, %s3
  %s6 = scalar_select 0, %s5, %s3
  // Predicated region
  $region2: #{net_forward.1} parent=0 // pred_check
    _
  $region3: #{net_forward.1} parent=0 // pred_check_branch
    %8 = sbr.rel (0) target = $region5
  $region4: #{net_forward.1} parent=0 // pred_region
    _
  $region5: #{net_forward.1} parent=0 // pred_fallthru
    _
  // Predicated region
  $region6: #{net_forward.1} parent=0 // pred_check
    _
  $region7: #{net_forward.1} parent=0 // pred_check_branch
    %10 = sbr.rel (0) target = $region9
  $region8: #{net_forward.1} parent=0 // pred_region
    _
  $region9: #{net_forward.1} parent=0 // pred_fallthru
    _
  %v11 = vld [vmem:[%s0] sm:$0xff]
  %v12 = vld [vmem:[%s1] sm:$0xff]
  %v13 = vld [vmem:[%s1 + $0x8] sm:$0xff]
  %v14 = vld [vmem:[%s1 + $0x10] sm:$0xff]
  %16 = vset.pattern.permute.xlu0 4
  %17 = vperm.xlu0 %16, %v12
  %v18 = vpop.permute.xlu0 %17
  %21 = vset.pattern.permute.xlu0 4
  %22 = vperm.xlu0 %21, %v13
  %v23 = vpop.permute.xlu0 %22
  %25 = vset.pattern.permute.xlu0 0
  %26 = vperm.xlu0 %25, %v12
  %v27 = vpop.permute.xlu0 %26
  %29 = vset.pattern.permute.xlu0 0
  %30 = vperm.xlu0 %29, %v13
  %v31 = vpop.permute.xlu0 %30
  %v33 = vlaneseq
  %v34 = vshrl.u32 %v33, 7
  %v35 = vsub.s32 0, %v34
  %v36 = vrot.slane %v11, %v35
  %v37 = vmul.f32 %v27, %v36
  %v38 = vmul.f32 %v31, %v36
  %v39 = vadd.f32 %v18, %v37
  %v40 = vadd.f32 %v23, %v38
  %41 = vset.pattern.permute.xlu0 1
  %42 = vperm.xlu0 %41, %v12
  %v43 = vpop.permute.xlu0 %42
  %45 = vset.pattern.permute.xlu0 1
  %46 = vperm.xlu0 %45, %v13
  %v47 = vpop.permute.xlu0 %46
  %v49 = vlaneseq
  %v50 = vshrl.u32 %v49, 7
  %v51 = vsub.s32 1, %v50
  %v52 = vrot.slane %v11, %v51
  %v53 = vmul.f32 %v43, %v52
  %v54 = vmul.f32 %v47, %v52
  %v55 = vadd.f32 %v39, %v53
  %v56 = vadd.f32 %v40, %v54
  %57 = vset.pattern.permute.xlu0 2
  %58 = vperm.xlu0 %57, %v12
  %v59 = vpop.permute.xlu0 %58
  %61 = vset.pattern.permute.xlu0 2
  %62 = vperm.xlu0 %61, %v13
  %v63 = vpop.permute.xlu0 %62
  %v65 = vlaneseq
  %v66 = vshrl.u32 %v65, 7
  %v67 = vsub.s32 2, %v66
  %v68 = vrot.slane %v11, %v67
  %v69 = vmul.f32 %v59, %v68
  %v70 = vmul.f32 %v63, %v68
  %v71 = vadd.f32 %v55, %v69
  %v72 = vadd.f32 %v56, %v70
  %73 = vset.pattern.permute.xlu0 3
  %74 = vperm.xlu0 %73, %v12
  %v75 = vpop.permute.xlu0 %74
  %77 = vset.pattern.permute.xlu0 3
  %78 = vperm.xlu0 %77, %v13
  %v79 = vpop.permute.xlu0 %78
  %v81 = vlaneseq
  %v82 = vshrl.u32 %v81, 7
  %v83 = vsub.s32 3, %v82
  %v84 = vrot.slane %v11, %v83
  %v85 = vmul.f32 %v75, %v84
  %v86 = vmul.f32 %v79, %v84
  %v87 = vadd.f32 %v71, %v85
  %v88 = vadd.f32 %v72, %v86
  %v89 = vmax.f32 %v87, 0.0
  %v90 = vmax.f32 %v88, 0.0
  %92 = vset.pattern.permute.xlu0 10
  %93 = vperm.xlu0 %92, %v14
  %v94 = vpop.permute.xlu0 %93
  %96 = vset.pattern.permute.xlu0 0
  %97 = vperm.xlu0 %96, %v14
  %v98 = vpop.permute.xlu0 %97
  %v100 = vlaneseq
  %v101 = vshrl.u32 %v100, 7
  %v102 = vsub.s32 0, %v101
  %v103 = vrot.slane %v89, %v102
  %v104 = vmul.f32 %v98, %v103
  %v105 = vadd.f32 %v94, %v104
  %106 = vset.pattern.permute.xlu0 1
  %107 = vperm.xlu0 %106, %v14
  %v108 = vpop.permute.xlu0 %107
  %v110 = vlaneseq
  %v111 = vshrl.u32 %v110, 7
  %v112 = vsub.s32 1, %v111
  %v113 = vrot.slane %v89, %v112
  %v114 = vmul.f32 %v108, %v113
  %v115 = vadd.f32 %v105, %v114
  %116 = vset.pattern.permute.xlu0 2
  %117 = vperm.xlu0 %116, %v14
  %v118 = vpop.permute.xlu0 %117
  %v120 = vlaneseq
  %v121 = vshrl.u32 %v120, 7
  %v122 = vsub.s32 2, %v121
  %v123 = vrot.slane %v89, %v122
  %v124 = vmul.f32 %v118, %v123
  %v125 = vadd.f32 %v115, %v124
  %126 = vset.pattern.permute.xlu0 3
  %127 = vperm.xlu0 %126, %v14
  %v128 = vpop.permute.xlu0 %127
  %v130 = vlaneseq
  %v131 = vshrl.u32 %v130, 7
  %v132 = vsub.s32 3, %v131
  %v133 = vrot.slane %v89, %v132
  %v134 = vmul.f32 %v128, %v133
  %v135 = vadd.f32 %v125, %v134
  %136 = vset.pattern.permute.xlu0 4
  %137 = vperm.xlu0 %136, %v14
  %v138 = vpop.permute.xlu0 %137
  %v140 = vlaneseq
  %v141 = vshrl.u32 %v140, 7
  %v142 = vsub.s32 4, %v141
  %v143 = vrot.slane %v89, %v142
  %v144 = vmul.f32 %v138, %v143
  %v145 = vadd.f32 %v135, %v144
  %146 = vset.pattern.permute.xlu0 5
  %147 = vperm.xlu0 %146, %v14
  %v148 = vpop.permute.xlu0 %147
  %v150 = vlaneseq
  %v151 = vshrl.u32 %v150, 7
  %v152 = vsub.s32 5, %v151
  %v153 = vrot.slane %v89, %v152
  %v154 = vmul.f32 %v148, %v153
  %v155 = vadd.f32 %v145, %v154
  %156 = vset.pattern.permute.xlu0 6
  %157 = vperm.xlu0 %156, %v14
  %v158 = vpop.permute.xlu0 %157
  %v160 = vlaneseq
  %v161 = vshrl.u32 %v160, 7
  %v162 = vsub.s32 6, %v161
  %v163 = vrot.slane %v89, %v162
  %v164 = vmul.f32 %v158, %v163
  %v165 = vadd.f32 %v155, %v164
  %166 = vset.pattern.permute.xlu0 7
  %167 = vperm.xlu0 %166, %v14
  %v168 = vpop.permute.xlu0 %167
  %v170 = vlaneseq
  %v171 = vshrl.u32 %v170, 7
  %v172 = vsub.s32 7, %v171
  %v173 = vrot.slane %v89, %v172
  %v174 = vmul.f32 %v168, %v173
  %v175 = vadd.f32 %v165, %v174
  %176 = vset.pattern.permute.xlu0 8
  %177 = vperm.xlu0 %176, %v14
  %v178 = vpop.permute.xlu0 %177
  %v180 = vlaneseq
  %v181 = vshrl.u32 %v180, 7
  %v182 = vsub.s32 0, %v181
  %v183 = vrot.slane %v90, %v182
  %v184 = vmul.f32 %v178, %v183
  %v185 = vadd.f32 %v175, %v184
  %186 = vset.pattern.permute.xlu0 9
  %187 = vperm.xlu0 %186, %v14
  %v188 = vpop.permute.xlu0 %187
  %v190 = vlaneseq
  %v191 = vshrl.u32 %v190, 7
  %v192 = vsub.s32 1, %v191
  %v193 = vrot.slane %v90, %v192
  %v194 = vmul.f32 %v188, %v193
  %v195 = vadd.f32 %v185, %v194
  %196 = vst [vmem:[%s2] sm:$0xff] %v195
  // Predicated region
  $region10: #{net_forward.1} parent=0 // pred_check
    _
  $region11: #{net_forward.1} parent=0 // pred_check_branch
    %198 = sbr.rel (0) target = $region13
  $region12: #{net_forward.1} parent=0 // pred_region
    _
  $region13: #{net_forward.1} parent=0 // pred_fallthru
    _
  // Predicated region
  $region14: #{net_forward.1} parent=0 // pred_check
    _
  $region15: #{net_forward.1} parent=0 // pred_check_branch
    %200 = sbr.rel (0) target = $region17
  $region16: #{net_forward.1} parent=0 // pred_region
    _
  $region17: #{net_forward.1} parent=0 // pred_fallthru
    _

</llo_original>
